<compile_context>
chip_gen: v7x
topology: tpu7x:2x2x1
jax: 0.10.0
libtpu: 0.0.40
codegen_flags: <defaults>
</compile_context>

<pallas_src>
import functools

import jax
import jax.numpy as jnp
from jax.experimental import pallas as pl
from jax.experimental.pallas import tpu as pltpu


# Finite "minus infinity" for the running max.  Assumes logits never approach
# float32 min / -inf (representable in bf16 too: |x| < bf16 max ~3.39e38).
_NEG_LARGE = -3.0e38


def _round_up(x, m):
    return ((x + m - 1) // m) * m


def _vmem_capacity_bytes():
    """Physical VMEM per TensorCore; conservative (v7x) fallback if unknown."""
    try:
        info = pltpu.get_tpu_info()
        cap = getattr(info, "vmem_capacity_bytes", None)
        if cap:
            return int(cap)
    except Exception:
        pass
    return 64 * 1024 * 1024


def _choose_tiles(batch, num_classes, itemsize, vmem_bytes):
    """Pick (tile_b, tile_c).

    Class tile: full C when moderate (block last dim == full array dim is
    always legal), otherwise lane-dense 4096 chunks.
    Batch tile: sized from a per-buffer byte budget (double-buffered by the
    pipeline), generation-aware; on small-VMEM chips (v7x, 2 TCs) the batch
    axis is additionally split so the "parallel" grid axis has >=2 tiles.
    """
    if num_classes <= 8192:
        tile_c = num_classes
    else:
        tile_c = 4096

    big_vmem = vmem_bytes >= 100 * 1024 * 1024      # v5e / v6e (128 MiB)
    per_buf_budget = (14 if big_vmem else 6) * 1024 * 1024

    tile_b = per_buf_budget // (tile_c * itemsize)
    tile_b = max(8, min(8192, (tile_b // 8) * 8))
    if (not big_vmem) and batch > 8:
        # v7x: >=2 (aim 4) batch tiles so both TensorCores get work.
        tile_b = min(tile_b, _round_up(max(1, -(-batch // 4)), 8))
    tile_b = min(tile_b, _round_up(batch, 8))
    return tile_b, tile_c


def _cw_kernel_single(logits_ref, targets_ref, out_ref, *, margin,
                      compute_dtype, num_classes, mask_classes):
    """Single class tile (num_c_tiles == 1): one pass, no scratch, no pl.when."""
    tile_b, tile_c = logits_ref.shape
    logits = logits_ref[...].astype(compute_dtype)        # no-op for bf16-native
    tgt = targets_ref[...]                                 # (tile_b, 1) int32

    local_cls = jax.lax.broadcasted_iota(jnp.int32, (tile_b, tile_c), 1)
    is_target = local_cls == tgt                           # targets < C, so OOB
                                                           # cols never match.
    zero = jnp.asarray(0.0, compute_dtype)
    self_row = jnp.sum(jnp.where(is_target, logits, zero),
                       axis=1, keepdims=True).astype(jnp.float32)

    other = jnp.where(is_target, jnp.asarray(-1000.0, compute_dtype), logits)
    if mask_classes:  # trace-time: only when num_classes % tile_c != 0
        other = jnp.where(local_cls < num_classes, other,
                          jnp.asarray(_NEG_LARGE, compute_dtype))
    other_row = jnp.max(other, axis=1, keepdims=True).astype(jnp.float32)

    out_ref[...] = jnp.maximum(self_row - other_row + jnp.float32(margin), 0.0)


def _cw_kernel_multi(logits_ref, targets_ref, out_ref, self_acc, other_acc, *,
                     margin, compute_dtype, num_classes, mask_classes, tile_c):
    """Tiled class axis: running sum / running max in VMEM scratch."""
    ci = pl.program_id(1)            # class-tile index ("arbitrary", reduction)
    tile_b, _ = logits_ref.shape

    @pl.when(ci == 0)
    def _init():
        self_acc[...] = jnp.zeros_like(self_acc)
        other_acc[...] = jnp.full_like(other_acc, _NEG_LARGE)

    logits = logits_ref[...].astype(compute_dtype)
    # Fold the class-tile offset into the scalar side: (tile_b,1) int sub,
    # loop-invariant local iota.
    tgt_local = targets_ref[...] - ci * tile_c             # (tile_b, 1) int32
    local_cls = jax.lax.broadcasted_iota(jnp.int32, (tile_b, tile_c), 1)
    is_target = local_cls == tgt_local

    zero = jnp.asarray(0.0, compute_dtype)
    self_part = jnp.sum(jnp.where(is_target, logits, zero),
                        axis=1, keepdims=True).astype(jnp.float32)

    other = jnp.where(is_target, jnp.asarray(-1000.0, compute_dtype), logits)
    if mask_classes:  # trace-time: only when num_classes % tile_c != 0
        limit = num_classes - ci * tile_c
        other = jnp.where(local_cls < limit, other,
                          jnp.asarray(_NEG_LARGE, compute_dtype))
    other_part = jnp.max(other, axis=1, keepdims=True).astype(jnp.float32)

    self_acc[...] = self_acc[...] + self_part
    other_acc[...] = jnp.maximum(other_acc[...], other_part)

    @pl.when(ci == pl.num_programs(1) - 1)
    def _finalize():
        out_ref[...] = jnp.maximum(
            self_acc[...] - other_acc[...] + jnp.float32(margin), 0.0)


def cw_loss(logits, targets, *, num_classes, margin=50.0, reduce=True,
            tile_b=None, tile_c=None):
    """Pallas TPU implementation of CWLoss.forward.

    Args:
      logits:  (B, num_classes) float32 or bfloat16 predictions.
      targets: (B,) integer class labels in [0, num_classes).
    Returns:
      scalar float32 loss.
    """
    batch, c = logits.shape
    assert c == num_classes
    targets2d = targets.astype(jnp.int32).reshape(batch, 1)

    vmem_bytes = _vmem_capacity_bytes()
    auto_tb, auto_tc = _choose_tiles(batch, num_classes,
                                     jnp.dtype(logits.dtype).itemsize,
                                     vmem_bytes)
    tile_b = auto_tb if tile_b is None else tile_b
    tile_c = auto_tc if tile_c is None else tile_c

    num_b_tiles = pl.cdiv(batch, tile_b)
    num_c_tiles = pl.cdiv(num_classes, tile_c)
    padded_b = num_b_tiles * tile_b

    # bf16 inputs: stay packed (exact selects / max); f32 otherwise.  On v5e
    # Mosaic upcasts internally (no bf16 VPU) — still correct.
    compute_dtype = (jnp.bfloat16 if logits.dtype == jnp.bfloat16
                     else jnp.float32)
    mask_classes = (num_classes % tile_c) != 0
    vmem_limit = (64 * 1024 * 1024 if vmem_bytes >= 100 * 1024 * 1024
                  else 32 * 1024 * 1024)

    if num_c_tiles == 1:
        kernel = functools.partial(
            _cw_kernel_single, margin=float(margin),
            compute_dtype=compute_dtype, num_classes=num_classes,
            mask_classes=mask_classes)
        per_row = pl.pallas_call(
            kernel,
            out_shape=jax.ShapeDtypeStruct((padded_b, 1), jnp.float32),
            grid_spec=pltpu.PrefetchScalarGridSpec(
                num_scalar_prefetch=0,
                grid=(num_b_tiles,),
                in_specs=[
                    pl.BlockSpec((tile_b, tile_c), lambda i: (i, 0)),  # logits
                    pl.BlockSpec((tile_b, 1), lambda i: (i, 0)),       # targets
                ],
                out_specs=pl.BlockSpec((tile_b, 1), lambda i: (i, 0)),
            ),
            compiler_params=pltpu.CompilerParams(
                dimension_semantics=("parallel",),
                vmem_limit_bytes=vmem_limit),
        )(logits, targets2d)
    else:
        # For very large C, consider pipeline_mode=pl.Buffered(3) on the
        # logits BlockSpec if profiling shows exposed per-step DMA.
        kernel = functools.partial(
            _cw_kernel_multi, margin=float(margin),
            compute_dtype=compute_dtype, num_classes=num_classes,
            mask_classes=mask_classes, tile_c=tile_c)
        per_row = pl.pallas_call(
            kernel,
            out_shape=jax.ShapeDtypeStruct((padded_b, 1), jnp.float32),
            grid_spec=pltpu.PrefetchScalarGridSpec(
                num_scalar_prefetch=0,
                grid=(num_b_tiles, num_c_tiles),
                in_specs=[
                    pl.BlockSpec((tile_b, tile_c), lambda i, j: (i, j)),
                    pl.BlockSpec((tile_b, 1), lambda i, j: (i, 0)),
                ],
                out_specs=pl.BlockSpec((tile_b, 1), lambda i, j: (i, 0)),
                scratch_shapes=[pltpu.VMEM((tile_b, 1), jnp.float32),   # self
                                pltpu.VMEM((tile_b, 1), jnp.float32)],  # other
            ),
            compiler_params=pltpu.CompilerParams(
                dimension_semantics=("parallel", "arbitrary"),
                vmem_limit_bytes=vmem_limit),
        )(logits, targets2d)

    # Tiny combine in the wrapper: drop padded rows, negate, sum, divide by
    # the GLOBAL batch size.
    loss = -jnp.sum(per_row[:batch, 0])
    if reduce:
        loss = loss / batch
    return loss


def _cw_loss_ref(logits, targets, *, num_classes, margin=50.0, reduce=True):
    """Pure-JAX reference for correctness checking."""
    logits = logits.astype(jnp.float32)
    onehot = jax.nn.one_hot(targets, num_classes, dtype=jnp.float32)
    self_loss = jnp.sum(onehot * logits, axis=1)
    other_loss = jnp.max((1.0 - onehot) * logits - onehot * 1000.0, axis=1)
    loss = -jnp.sum(jnp.maximum(self_loss - other_loss + margin, 0.0))
    if reduce:
        loss = loss / logits.shape[0]
    return loss


if __name__ == "__main__":
    key = jax.random.PRNGKey(0)

    # --- test 1: small f32, single class tile (specialized kernel) -------
    B, NUM_CLASSES = 8, 16
    k_logits, k_targets, key = jax.random.split(key, 3)
    logits = jax.random.normal(k_logits, (B, NUM_CLASSES), jnp.float32) * 5.0
    targets = jax.random.randint(k_targets, (B,), 0, NUM_CLASSES, jnp.int32)

    loss = cw_loss(logits, targets, num_classes=NUM_CLASSES)
    loss = jax.block_until_ready(loss)
    ref = _cw_loss_ref(logits, targets, num_classes=NUM_CLASSES)
    assert jnp.allclose(loss, ref, atol=1e-5, rtol=1e-5), (loss, ref)

    # --- test 2: forced small tiles -> multi-tile grid with edge blocks --
    B2, C2 = 10, 300
    k_logits2, k_targets2, key = jax.random.split(key, 3)
    logits2 = jax.random.normal(k_logits2, (B2, C2), jnp.float32) * 5.0
    targets2 = jax.random.randint(k_targets2, (B2,), 0, C2, jnp.int32)

    loss2 = cw_loss(logits2, targets2, num_classes=C2, tile_b=8, tile_c=128)
    loss2 = jax.block_until_ready(loss2)
    ref2 = _cw_loss_ref(logits2, targets2, num_classes=C2)
    assert jnp.allclose(loss2, ref2, atol=1e-5, rtol=1e-5), (loss2, ref2)

    # --- test 3: bf16 inputs -> bf16-native select/max path --------------
    B3, C3 = 16, 128
    k_logits3, k_targets3, key = jax.random.split(key, 3)
    logits3 = (jax.random.normal(k_logits3, (B3, C3), jnp.float32) * 5.0
               ).astype(jnp.bfloat16)
    targets3 = jax.random.randint(k_targets3, (B3,), 0, C3, jnp.int32)

    loss3 = cw_loss(logits3, targets3, num_classes=C3, reduce=False)
    loss3 = jax.block_until_ready(loss3)
    ref3 = _cw_loss_ref(logits3, targets3, num_classes=C3, reduce=False)
    assert jnp.allclose(loss3, ref3, atol=1e-4, rtol=1e-5), (loss3, ref3)

    print("KERNEL_OK")
</pallas_src>

<mosaic_0001>
module attributes {stable_mosaic.version = 11 : i64} {
  func.func @_cw_kernel_single(%arg0: i32, %arg1: memref<8x16xf32, #tpu.memory_space<vmem>>, %arg2: memref<8x1xi32, #tpu.memory_space<vmem>>, %arg3: memref<8x1xf32, #tpu.memory_space<vmem>>) attributes {dimension_semantics = [#tpu.dimension_semantics<parallel>], iteration_bounds = array<i64: 1>, scalar_prefetch = 0 : i64, scratch_operands = 0 : i64, tpu.core_type = #tpu.core_type<tc>, window_params = [{transform_indices = @transform_0, window_bounds = array<i64: 8, 16>}, {transform_indices = @transform_1, window_bounds = array<i64: 8, 1>}, {transform_indices = @transform_2, window_bounds = array<i64: 8, 1>}]} {
    %c0 = arith.constant 0 : index
    %c0_0 = arith.constant 0 : index
    %0 = vector.load %arg1[%c0, %c0_0] : memref<8x16xf32, #tpu.memory_space<vmem>>, vector<8x16xf32>
    %c0_1 = arith.constant 0 : index
    %c0_2 = arith.constant 0 : index
    %1 = vector.load %arg2[%c0_1, %c0_2] : memref<8x1xi32, #tpu.memory_space<vmem>>, vector<8x1xi32>
    %2 = tpu.iota {dimensions = array<i32: 1>} : vector<8x16xi32>
    %3 = vector.broadcast %1 : vector<8x1xi32> to vector<8x16xi32>
    %4 = arith.cmpi eq, %2, %3 : vector<8x16xi32>
    %cst = arith.constant 0.000000e+00 : f32
    %5 = vector.broadcast %cst : f32 to vector<8x16xf32>
    %6 = arith.select %4, %0, %5 : vector<8x16xi1>, vector<8x16xf32>
    %cst_3 = arith.constant dense<0.000000e+00> : vector<8xf32>
    %7 = vector.multi_reduction <add>, %6, %cst_3 [1] : vector<8x16xf32> to vector<8xf32>
    %8 = vector.shape_cast %7 : vector<8xf32> to vector<8x1xf32>
    %cst_4 = arith.constant -1.000000e+03 : f32
    %9 = vector.broadcast %cst_4 : f32 to vector<8x16xf32>
    %10 = arith.select %4, %9, %0 : vector<8x16xi1>, vector<8x16xf32>
    %cst_5 = arith.constant dense<0xFF800000> : vector<8xf32>
    %11 = vector.multi_reduction <maximumf>, %10, %cst_5 [1] : vector<8x16xf32> to vector<8xf32>
    %12 = vector.shape_cast %11 : vector<8xf32> to vector<8x1xf32>
    %13 = arith.subf %8, %12 : vector<8x1xf32>
    %cst_6 = arith.constant 5.000000e+01 : f32
    %14 = vector.broadcast %cst_6 : f32 to vector<8x1xf32>
    %15 = arith.addf %13, %14 : vector<8x1xf32>
    %cst_7 = arith.constant 0.000000e+00 : f32
    %16 = vector.broadcast %cst_7 : f32 to vector<8x1xf32>
    %17 = arith.maximumf %15, %16 : vector<8x1xf32>
    %c0_8 = arith.constant 0 : index
    %c0_9 = arith.constant 0 : index
    %18 = vector.load %arg3[%c0_8, %c0_9] : memref<8x1xf32, #tpu.memory_space<vmem>>, vector<8x1xf32>
    tpu.vector_store %arg3[%c0_8, %c0_9], %17 {strides = array<i32>} : memref<8x1xf32, #tpu.memory_space<vmem>>, vector<8x1xf32>,
    return
  }
  func.func @transform_0(%arg0: i32) -> (i32, i32) {
    %c0_i32 = arith.constant 0 : i32
    %c0_i32_0 = arith.constant 0 : i32
    return %arg0, %c0_i32 : i32, i32
  }
  func.func @transform_1(%arg0: i32) -> (i32, i32) {
    %c0_i32 = arith.constant 0 : i32
    %c0_i32_0 = arith.constant 0 : i32
    return %arg0, %c0_i32 : i32, i32
  }
  func.func @transform_2(%arg0: i32) -> (i32, i32) {
    %c0_i32 = arith.constant 0 : i32
    %c0_i32_0 = arith.constant 0 : i32
    return %arg0, %c0_i32 : i32, i32
  }
}

</mosaic_0001>

<llo_original>
// kernel: tpu_custom_call.1
$region0: #{tpu_custom_call.1}
  #allocation0 [shape = 'u32[]', space=smem, size = 0x4, offset = 0x4, fixed_abs, tag = 'smem constant byte address 0x4 - core index']
  #allocation1 [shape = 'u32[144,128]{1,0:T(1,128)}', space=vmem, size = 0x12000, scoped, tag = 'internal scratch']
  %s0 = inlined_call_operand.vmem [shape: f32[8,16], index: 0, kind: input, shape index: {}]
  %s1 = inlined_call_operand.vmem [shape: s32[8,1], index: 1, kind: input, shape index: {}]
  %s2 = inlined_call_operand.vmem [shape: f32[8,1], index: 2, kind: output, shape index: {}]
  %s3 = sld [smem:[#allocation0]]
  $region18: #{tpu_custom_call.1} parent=0
    _
  %s5 = ssub.s32 1, %s3
  %s6 = scalar_select 0, %s5, %s3
  // Predicated region
  $region2: #{tpu_custom_call.1} parent=0 // pred_check
    _
  $region3: #{tpu_custom_call.1} parent=0 // pred_check_branch
    %8 = sbr.rel (0) target = $region5
  $region4: #{tpu_custom_call.1} parent=0 // pred_region
    _
  $region5: #{tpu_custom_call.1} parent=0 // pred_fallthru
    _
  // Predicated region
  $region6: #{tpu_custom_call.1} parent=0 // pred_check
    _
  $region7: #{tpu_custom_call.1} parent=0 // pred_check_branch
    %10 = sbr.rel (0) target = $region9
  $region8: #{tpu_custom_call.1} parent=0 // pred_region
    _
  $region9: #{tpu_custom_call.1} parent=0 // pred_fallthru
    _
  %v11 = vld [vmem:[%s0] sm:$0xff]
  %v12 = vld [vmem:[%s1] sm:$0xff]
  %v13 = vlaneseq
  %v14 = vand.u32 %v13, 127
  %15 = vset.pattern.permute.xlu0 0
  %16 = vperm.xlu0 %15, %v12
  %v17 = vpop.permute.xlu0 %16
  %vm18 = vcmp.eq.s32.totalorder %v14, %v17
  %v19 = vsel %vm18, %v11, 0.0
  %vm20 = vcmask 130048
  %v21 = vsel %vm20, %v19, 0.0
  %22 = vadd.xlane.f32.xlu0 %v21
  %v23 = vpop.xlane.xlu0 %22
  %v24 = vsel %vm18, -1000.0, %v11
  %v25 = vsel %vm20, %v24, -inf
  %26 = vmax.xlane.f32.xlu0 %v25
  %v27 = vpop.xlane.xlu0 %26
  %v28 = vsub.f32 %v23, %v27
  %v29 = vadd.f32 %v28, 50.0
  %v30 = vmax.f32 %v29, 0.0
  %vm31 = vcmask 7168
  %32 = vst.msk [vmem:[%s2] sm:$0xff] %vm31, %v30
  // Predicated region
  $region10: #{tpu_custom_call.1} parent=0 // pred_check
    _
  $region11: #{tpu_custom_call.1} parent=0 // pred_check_branch
    %34 = sbr.rel (0) target = $region13
  $region12: #{tpu_custom_call.1} parent=0 // pred_region
    _
  $region13: #{tpu_custom_call.1} parent=0 // pred_fallthru
    _
  // Predicated region
  $region14: #{tpu_custom_call.1} parent=0 // pred_check
    _
  $region15: #{tpu_custom_call.1} parent=0 // pred_check_branch
    %36 = sbr.rel (0) target = $region17
  $region16: #{tpu_custom_call.1} parent=0 // pred_region
    _
  $region17: #{tpu_custom_call.1} parent=0 // pred_fallthru
    _

</llo_original>
